<compile_context>
chip_gen: v7x
topology: tpu7x:2x2x1
jax: 0.10.0
libtpu: 0.0.40
codegen_flags: <defaults>
</compile_context>

<pallas_src>
import functools
import numpy as np

import jax
import jax.numpy as jnp
from jax.experimental import pallas as pl
from jax.experimental.pallas import tpu as pltpu


def _qfuzzy_kernel(cs_ref, x_ref, o_ref, *, k):
    # cs_ref: SMEM (k, 11) = [u00r,u00i, u01r,u01i, u10r,u10i, u11r,u11i, hd, wr, wi]
    #         with U1 = RZ(t2)RY(t1)RZ(t0),  H = U2^dagger Z U2 = [[2*hd, w],[w*, -2*hd]]
    # x_ref : VMEM (tm, tc)  input angles
    # o_ref : VMEM (k, tm, tc)  (<Z>+1)/2 per fuzzifier
    x = x_ref[...]
    cx = jnp.cos(0.5 * x)
    sx = jnp.sin(0.5 * x)
    for ki in range(k):
        u00r = cs_ref[ki, 0]; u00i = cs_ref[ki, 1]
        u01r = cs_ref[ki, 2]; u01i = cs_ref[ki, 3]
        u10r = cs_ref[ki, 4]; u10i = cs_ref[ki, 5]
        u11r = cs_ref[ki, 6]; u11i = cs_ref[ki, 7]
        hd = cs_ref[ki, 8]
        wr = cs_ref[ki, 9]
        wi = cs_ref[ki, 10]

        # u = U1 @ (cx, sx)   (state after the first RY(x) is real)
        uar = u00r * cx + u01r * sx
        uai = u00i * cx + u01i * sx
        ubr = u10r * cx + u11r * sx
        ubi = u10i * cx + u11i * sx

        # psi = RY(x) @ u
        ar = cx * uar - sx * ubr
        ai = cx * uai - sx * ubi
        br = sx * uar + cx * ubr
        bi = sx * uai + cx * ubi

        # (<Z> + 1)/2 with U2 folded into H:  0.5*d*p + wr*q - wi*r + 0.5
        p = (ar * ar + ai * ai) - (br * br + bi * bi)
        q = ar * br + ai * bi
        r = ar * bi - ai * br
        o_ref[ki] = (hd * p + wr * q - wi * r + 0.5).astype(o_ref.dtype)


def _gate_constants(params):
    """Fold the trainable triples into U1 (2x2 unitary applied between the two
    RY(x) encoders) and the measurement Hermitian H = U2^dagger Z U2 =
    [[d, w], [conj(w), -d]].  Returns a (k, 11) float32 table for SMEM."""
    p = params.astype(jnp.float32)
    t0, t1, t2, p0, p1, p2 = [p[:, j] for j in range(6)]

    def rz(th):
        e = jnp.exp(-0.5j * th)
        z = jnp.zeros_like(e)
        return jnp.stack([jnp.stack([e, z], -1),
                          jnp.stack([z, jnp.conj(e)], -1)], -2)

    def ry(th):
        c = jnp.cos(0.5 * th).astype(jnp.complex64)
        s = jnp.sin(0.5 * th).astype(jnp.complex64)
        return jnp.stack([jnp.stack([c, -s], -1),
                          jnp.stack([s, c], -1)], -2)

    u1 = rz(t2) @ ry(t1) @ rz(t0)      # (k, 2, 2)
    u2 = rz(p2) @ ry(p1) @ rz(p0)      # (k, 2, 2)
    d = jnp.abs(u2[:, 0, 0]) ** 2 - jnp.abs(u2[:, 1, 0]) ** 2
    w = jnp.conj(u2[:, 0, 0]) * u2[:, 0, 1] - jnp.conj(u2[:, 1, 0]) * u2[:, 1, 1]
    return jnp.stack([
        u1[:, 0, 0].real, u1[:, 0, 0].imag,
        u1[:, 0, 1].real, u1[:, 0, 1].imag,
        u1[:, 1, 0].real, u1[:, 1, 0].imag,
        u1[:, 1, 1].real, u1[:, 1, 1].imag,
        0.5 * d, w.real, w.imag,
    ], axis=-1).astype(jnp.float32)


def qfuzzy_layer(x, params, *, block_rows=1024, lane_cols=512,
                 out_dtype=jnp.float32):
    """params: (k, 6) rotation angles [t0, t1, t2, p0, p1, p2] per fuzzifier.

    Returns (N, 1, k), N = x.size (== torch.stack of k (N,1) outputs, dim=-1).
    Set out_dtype=jnp.bfloat16 to halve output HBM traffic if the consumer
    tolerates it (math stays f32 in-kernel)."""
    k = params.shape[0]
    x_flat = x.reshape(-1).astype(jnp.float32)
    n = x_flat.shape[0]

    # Lane (last) dim: wide multiple of 128; sublane block: multiple of 8.
    tc = lane_cols if n >= 8 * lane_cols else 128
    r0 = pl.cdiv(n, tc)
    tm = min(block_rows, pl.cdiv(r0, 8) * 8)
    # Keep the double-buffered working set (1 input + k output blocks) well
    # under the default ~32 MiB scoped VMEM (also safe on v7x's 64 MiB).
    vmem_budget = 24 * 1024 * 1024
    max_block_elems = max(8 * 128, vmem_budget // (2 * (1 + k) * 4))
    tm = min(tm, max(8, (max_block_elems // tc) // 8 * 8))
    rows = pl.cdiv(r0, tm) * tm
    n_pad = rows * tc
    if n_pad != n:
        # TODO(synk): ragged tail handled by a one-off pad of x; skipped for
        # multiple-of-block inputs (the common case, e.g. the demo below).
        x_flat = jnp.pad(x_flat, (0, n_pad - n))
    x2d = x_flat.reshape(rows, tc)

    cs = _gate_constants(params)            # (k, 11) scalar gate constants

    grid = (rows // tm,)
    out = pl.pallas_call(
        functools.partial(_qfuzzy_kernel, k=k),
        out_shape=jax.ShapeDtypeStruct((k, rows, tc), out_dtype),
        grid_spec=pl.GridSpec(
            grid=grid,
            in_specs=[
                pl.BlockSpec(memory_space=pltpu.MemorySpace.SMEM),  # gate constants
                pl.BlockSpec((tm, tc), lambda i: (i, 0)),           # x block
            ],
            out_specs=pl.BlockSpec((k, tm, tc), lambda i: (0, i, 0)),
        ),
        compiler_params=pltpu.CompilerParams(
            dimension_semantics=("parallel",)),
    )(cs, x2d)

    # Match torch.stack([...(N,1)], dim=-1) -> (N, 1, k).  (If the consumer can
    # take (k, N) directly, drop this transpose to save an extra HBM pass.)
    out = out.reshape(k, n_pad)[:, :n].T
    return out.reshape(n, 1, k)


def _reference(x, params):
    # Pure-JAX reference (1-qubit statevector simulation), gate-by-gate.
    xf = x.reshape(-1).astype(jnp.float32)
    outs = []
    for ki in range(params.shape[0]):
        t0, t1, t2, p0, p1, p2 = [params[ki, j] for j in range(6)]
        a = jnp.cos(0.5 * xf) + 0j
        b = jnp.sin(0.5 * xf) + 0j

        def rz(a, b, th):
            return a * jnp.exp(-0.5j * th), b * jnp.exp(0.5j * th)

        def ry(a, b, th):
            c, s = jnp.cos(0.5 * th), jnp.sin(0.5 * th)
            return c * a - s * b, s * a + c * b

        a, b = rz(a, b, t0); a, b = ry(a, b, t1); a, b = rz(a, b, t2)
        a, b = ry(a, b, xf)
        a, b = rz(a, b, p0); a, b = ry(a, b, p1); a, b = rz(a, b, p2)
        z = jnp.abs(a) ** 2 - jnp.abs(b) ** 2
        outs.append(((z + 1.0) * 0.5).reshape(-1, 1))
    return jnp.stack(outs, axis=-1)


if __name__ == "__main__":
    key = jax.random.PRNGKey(0)
    kx, kp = jax.random.split(key)

    k = 3                                   # number of fuzzifiers
    x = jax.random.normal(kx, (2, 4, 16, 16), dtype=jnp.float32)   # NCHW-like input
    params = jax.random.uniform(kp, (k, 6), minval=-jnp.pi, maxval=jnp.pi,
                                dtype=jnp.float32)

    out = qfuzzy_layer(x, params)
    out = jax.block_until_ready(out)

    ref = _reference(x, params)
    assert out.shape == (x.size, 1, k)
    np.testing.assert_allclose(np.asarray(out), np.asarray(ref),
                               rtol=1e-5, atol=2e-5)

    print("KERNEL_OK")
</pallas_src>

<mosaic_0001>
module attributes {stable_mosaic.version = 11 : i64} {
  func.func @_qfuzzy_kernel(%arg0: i32, %arg1: memref<3x11xf32, #tpu.memory_space<smem>>, %arg2: memref<16x128xf32, #tpu.memory_space<vmem>>, %arg3: memref<3x16x128xf32, #tpu.memory_space<vmem>>) attributes {dimension_semantics = [#tpu.dimension_semantics<parallel>], iteration_bounds = array<i64: 1>, scalar_prefetch = 0 : i64, scratch_operands = 0 : i64, tpu.core_type = #tpu.core_type<tc>, window_params = [{transform_indices = @transform_0, window_bounds = array<i64: 3, 11>}, {transform_indices = @transform_1, window_bounds = array<i64: 16, 128>}, {transform_indices = @transform_2, window_bounds = array<i64: 3, 16, 128>}]} {
    %c0 = arith.constant 0 : index
    %c0_0 = arith.constant 0 : index
    %0 = vector.load %arg2[%c0, %c0_0] : memref<16x128xf32, #tpu.memory_space<vmem>>, vector<16x128xf32>
    %cst = arith.constant 5.000000e-01 : f32
    %1 = vector.broadcast %cst : f32 to vector<16x128xf32>
    %2 = arith.mulf %1, %0 : vector<16x128xf32>
    %3 = math.cos %2 : vector<16x128xf32>
    %cst_1 = arith.constant 5.000000e-01 : f32
    %4 = vector.broadcast %cst_1 : f32 to vector<16x128xf32>
    %5 = arith.mulf %4, %0 : vector<16x128xf32>
    %6 = math.sin %5 : vector<16x128xf32>
    %c0_2 = arith.constant 0 : index
    %c0_3 = arith.constant 0 : index
    %7 = memref.load %arg1[%c0_2, %c0_3] : memref<3x11xf32, #tpu.memory_space<smem>>
    %c0_4 = arith.constant 0 : index
    %c1 = arith.constant 1 : index
    %8 = memref.load %arg1[%c0_4, %c1] : memref<3x11xf32, #tpu.memory_space<smem>>
    %c0_5 = arith.constant 0 : index
    %c2 = arith.constant 2 : index
    %9 = memref.load %arg1[%c0_5, %c2] : memref<3x11xf32, #tpu.memory_space<smem>>
    %c0_6 = arith.constant 0 : index
    %c3 = arith.constant 3 : index
    %10 = memref.load %arg1[%c0_6, %c3] : memref<3x11xf32, #tpu.memory_space<smem>>
    %c0_7 = arith.constant 0 : index
    %c4 = arith.constant 4 : index
    %11 = memref.load %arg1[%c0_7, %c4] : memref<3x11xf32, #tpu.memory_space<smem>>
    %c0_8 = arith.constant 0 : index
    %c5 = arith.constant 5 : index
    %12 = memref.load %arg1[%c0_8, %c5] : memref<3x11xf32, #tpu.memory_space<smem>>
    %c0_9 = arith.constant 0 : index
    %c6 = arith.constant 6 : index
    %13 = memref.load %arg1[%c0_9, %c6] : memref<3x11xf32, #tpu.memory_space<smem>>
    %c0_10 = arith.constant 0 : index
    %c7 = arith.constant 7 : index
    %14 = memref.load %arg1[%c0_10, %c7] : memref<3x11xf32, #tpu.memory_space<smem>>
    %c0_11 = arith.constant 0 : index
    %c8 = arith.constant 8 : index
    %15 = memref.load %arg1[%c0_11, %c8] : memref<3x11xf32, #tpu.memory_space<smem>>
    %c0_12 = arith.constant 0 : index
    %c9 = arith.constant 9 : index
    %16 = memref.load %arg1[%c0_12, %c9] : memref<3x11xf32, #tpu.memory_space<smem>>
    %c0_13 = arith.constant 0 : index
    %c10 = arith.constant 10 : index
    %17 = memref.load %arg1[%c0_13, %c10] : memref<3x11xf32, #tpu.memory_space<smem>>
    %18 = vector.broadcast %7 : f32 to vector<16x128xf32>
    %19 = arith.mulf %18, %3 : vector<16x128xf32>
    %20 = vector.broadcast %9 : f32 to vector<16x128xf32>
    %21 = arith.mulf %20, %6 : vector<16x128xf32>
    %22 = arith.addf %19, %21 : vector<16x128xf32>
    %23 = vector.broadcast %8 : f32 to vector<16x128xf32>
    %24 = arith.mulf %23, %3 : vector<16x128xf32>
    %25 = vector.broadcast %10 : f32 to vector<16x128xf32>
    %26 = arith.mulf %25, %6 : vector<16x128xf32>
    %27 = arith.addf %24, %26 : vector<16x128xf32>
    %28 = vector.broadcast %11 : f32 to vector<16x128xf32>
    %29 = arith.mulf %28, %3 : vector<16x128xf32>
    %30 = vector.broadcast %13 : f32 to vector<16x128xf32>
    %31 = arith.mulf %30, %6 : vector<16x128xf32>
    %32 = arith.addf %29, %31 : vector<16x128xf32>
    %33 = vector.broadcast %12 : f32 to vector<16x128xf32>
    %34 = arith.mulf %33, %3 : vector<16x128xf32>
    %35 = vector.broadcast %14 : f32 to vector<16x128xf32>
    %36 = arith.mulf %35, %6 : vector<16x128xf32>
    %37 = arith.addf %34, %36 : vector<16x128xf32>
    %38 = arith.mulf %3, %22 : vector<16x128xf32>
    %39 = arith.mulf %6, %32 : vector<16x128xf32>
    %40 = arith.subf %38, %39 : vector<16x128xf32>
    %41 = arith.mulf %3, %27 : vector<16x128xf32>
    %42 = arith.mulf %6, %37 : vector<16x128xf32>
    %43 = arith.subf %41, %42 : vector<16x128xf32>
    %44 = arith.mulf %6, %22 : vector<16x128xf32>
    %45 = arith.mulf %3, %32 : vector<16x128xf32>
    %46 = arith.addf %44, %45 : vector<16x128xf32>
    %47 = arith.mulf %6, %27 : vector<16x128xf32>
    %48 = arith.mulf %3, %37 : vector<16x128xf32>
    %49 = arith.addf %47, %48 : vector<16x128xf32>
    %50 = arith.mulf %40, %40 : vector<16x128xf32>
    %51 = arith.mulf %43, %43 : vector<16x128xf32>
    %52 = arith.addf %50, %51 : vector<16x128xf32>
    %53 = arith.mulf %46, %46 : vector<16x128xf32>
    %54 = arith.mulf %49, %49 : vector<16x128xf32>
    %55 = arith.addf %53, %54 : vector<16x128xf32>
    %56 = arith.subf %52, %55 : vector<16x128xf32>
    %57 = arith.mulf %40, %46 : vector<16x128xf32>
    %58 = arith.mulf %43, %49 : vector<16x128xf32>
    %59 = arith.addf %57, %58 : vector<16x128xf32>
    %60 = arith.mulf %40, %49 : vector<16x128xf32>
    %61 = arith.mulf %43, %46 : vector<16x128xf32>
    %62 = arith.subf %60, %61 : vector<16x128xf32>
    %63 = vector.broadcast %15 : f32 to vector<16x128xf32>
    %64 = arith.mulf %63, %56 : vector<16x128xf32>
    %65 = vector.broadcast %16 : f32 to vector<16x128xf32>
    %66 = arith.mulf %65, %59 : vector<16x128xf32>
    %67 = arith.addf %64, %66 : vector<16x128xf32>
    %68 = vector.broadcast %17 : f32 to vector<16x128xf32>
    %69 = arith.mulf %68, %62 : vector<16x128xf32>
    %70 = arith.subf %67, %69 : vector<16x128xf32>
    %cst_14 = arith.constant 5.000000e-01 : f32
    %71 = vector.broadcast %cst_14 : f32 to vector<16x128xf32>
    %72 = arith.addf %70, %71 : vector<16x128xf32>
    %c0_15 = arith.constant 0 : index
    %c0_16 = arith.constant 0 : index
    %c0_17 = arith.constant 0 : index
    %73 = vector.load %arg3[%c0_15, %c0_16, %c0_17] : memref<3x16x128xf32, #tpu.memory_space<vmem>>, vector<1x16x128xf32>
    %74 = vector.shape_cast %73 : vector<1x16x128xf32> to vector<16x128xf32>
    %75 = vector.shape_cast %72 : vector<16x128xf32> to vector<1x16x128xf32>
    tpu.vector_store %arg3[%c0_15, %c0_16, %c0_17], %75 {strides = array<i32>} : memref<3x16x128xf32, #tpu.memory_space<vmem>>, vector<1x16x128xf32>,
    %c1_18 = arith.constant 1 : index
    %c0_19 = arith.constant 0 : index
    %76 = memref.load %arg1[%c1_18, %c0_19] : memref<3x11xf32, #tpu.memory_space<smem>>
    %c1_20 = arith.constant 1 : index
    %c1_21 = arith.constant 1 : index
    %77 = memref.load %arg1[%c1_20, %c1_21] : memref<3x11xf32, #tpu.memory_space<smem>>
    %c1_22 = arith.constant 1 : index
    %c2_23 = arith.constant 2 : index
    %78 = memref.load %arg1[%c1_22, %c2_23] : memref<3x11xf32, #tpu.memory_space<smem>>
    %c1_24 = arith.constant 1 : index
    %c3_25 = arith.constant 3 : index
    %79 = memref.load %arg1[%c1_24, %c3_25] : memref<3x11xf32, #tpu.memory_space<smem>>
    %c1_26 = arith.constant 1 : index
    %c4_27 = arith.constant 4 : index
    %80 = memref.load %arg1[%c1_26, %c4_27] : memref<3x11xf32, #tpu.memory_space<smem>>
    %c1_28 = arith.constant 1 : index
    %c5_29 = arith.constant 5 : index
    %81 = memref.load %arg1[%c1_28, %c5_29] : memref<3x11xf32, #tpu.memory_space<smem>>
    %c1_30 = arith.constant 1 : index
    %c6_31 = arith.constant 6 : index
    %82 = memref.load %arg1[%c1_30, %c6_31] : memref<3x11xf32, #tpu.memory_space<smem>>
    %c1_32 = arith.constant 1 : index
    %c7_33 = arith.constant 7 : index
    %83 = memref.load %arg1[%c1_32, %c7_33] : memref<3x11xf32, #tpu.memory_space<smem>>
    %c1_34 = arith.constant 1 : index
    %c8_35 = arith.constant 8 : index
    %84 = memref.load %arg1[%c1_34, %c8_35] : memref<3x11xf32, #tpu.memory_space<smem>>
    %c1_36 = arith.constant 1 : index
    %c9_37 = arith.constant 9 : index
    %85 = memref.load %arg1[%c1_36, %c9_37] : memref<3x11xf32, #tpu.memory_space<smem>>
    %c1_38 = arith.constant 1 : index
    %c10_39 = arith.constant 10 : index
    %86 = memref.load %arg1[%c1_38, %c10_39] : memref<3x11xf32, #tpu.memory_space<smem>>
    %87 = vector.broadcast %76 : f32 to vector<16x128xf32>
    %88 = arith.mulf %87, %3 : vector<16x128xf32>
    %89 = vector.broadcast %78 : f32 to vector<16x128xf32>
    %90 = arith.mulf %89, %6 : vector<16x128xf32>
    %91 = arith.addf %88, %90 : vector<16x128xf32>
    %92 = vector.broadcast %77 : f32 to vector<16x128xf32>
    %93 = arith.mulf %92, %3 : vector<16x128xf32>
    %94 = vector.broadcast %79 : f32 to vector<16x128xf32>
    %95 = arith.mulf %94, %6 : vector<16x128xf32>
    %96 = arith.addf %93, %95 : vector<16x128xf32>
    %97 = vector.broadcast %80 : f32 to vector<16x128xf32>
    %98 = arith.mulf %97, %3 : vector<16x128xf32>
    %99 = vector.broadcast %82 : f32 to vector<16x128xf32>
    %100 = arith.mulf %99, %6 : vector<16x128xf32>
    %101 = arith.addf %98, %100 : vector<16x128xf32>
    %102 = vector.broadcast %81 : f32 to vector<16x128xf32>
    %103 = arith.mulf %102, %3 : vector<16x128xf32>
    %104 = vector.broadcast %83 : f32 to vector<16x128xf32>
    %105 = arith.mulf %104, %6 : vector<16x128xf32>
    %106 = arith.addf %103, %105 : vector<16x128xf32>
    %107 = arith.mulf %3, %91 : vector<16x128xf32>
    %108 = arith.mulf %6, %101 : vector<16x128xf32>
    %109 = arith.subf %107, %108 : vector<16x128xf32>
    %110 = arith.mulf %3, %96 : vector<16x128xf32>
    %111 = arith.mulf %6, %106 : vector<16x128xf32>
    %112 = arith.subf %110, %111 : vector<16x128xf32>
    %113 = arith.mulf %6, %91 : vector<16x128xf32>
    %114 = arith.mulf %3, %101 : vector<16x128xf32>
    %115 = arith.addf %113, %114 : vector<16x128xf32>
    %116 = arith.mulf %6, %96 : vector<16x128xf32>
    %117 = arith.mulf %3, %106 : vector<16x128xf32>
    %118 = arith.addf %116, %117 : vector<16x128xf32>
    %119 = arith.mulf %109, %109 : vector<16x128xf32>
    %120 = arith.mulf %112, %112 : vector<16x128xf32>
    %121 = arith.addf %119, %120 : vector<16x128xf32>
    %122 = arith.mulf %115, %115 : vector<16x128xf32>
    %123 = arith.mulf %118, %118 : vector<16x128xf32>
    %124 = arith.addf %122, %123 : vector<16x128xf32>
    %125 = arith.subf %121, %124 : vector<16x128xf32>
    %126 = arith.mulf %109, %115 : vector<16x128xf32>
    %127 = arith.mulf %112, %118 : vector<16x128xf32>
    %128 = arith.addf %126, %127 : vector<16x128xf32>
    %129 = arith.mulf %109, %118 : vector<16x128xf32>
    %130 = arith.mulf %112, %115 : vector<16x128xf32>
    %131 = arith.subf %129, %130 : vector<16x128xf32>
    %132 = vector.broadcast %84 : f32 to vector<16x128xf32>
    %133 = arith.mulf %132, %125 : vector<16x128xf32>
    %134 = vector.broadcast %85 : f32 to vector<16x128xf32>
    %135 = arith.mulf %134, %128 : vector<16x128xf32>
    %136 = arith.addf %133, %135 : vector<16x128xf32>
    %137 = vector.broadcast %86 : f32 to vector<16x128xf32>
    %138 = arith.mulf %137, %131 : vector<16x128xf32>
    %139 = arith.subf %136, %138 : vector<16x128xf32>
    %cst_40 = arith.constant 5.000000e-01 : f32
    %140 = vector.broadcast %cst_40 : f32 to vector<16x128xf32>
    %141 = arith.addf %139, %140 : vector<16x128xf32>
    %c1_41 = arith.constant 1 : index
    %c0_42 = arith.constant 0 : index
    %c0_43 = arith.constant 0 : index
    %142 = vector.load %arg3[%c1_41, %c0_42, %c0_43] : memref<3x16x128xf32, #tpu.memory_space<vmem>>, vector<1x16x128xf32>
    %143 = vector.shape_cast %142 : vector<1x16x128xf32> to vector<16x128xf32>
    %144 = vector.shape_cast %141 : vector<16x128xf32> to vector<1x16x128xf32>
    tpu.vector_store %arg3[%c1_41, %c0_42, %c0_43], %144 {strides = array<i32>} : memref<3x16x128xf32, #tpu.memory_space<vmem>>, vector<1x16x128xf32>,
    %c2_44 = arith.constant 2 : index
    %c0_45 = arith.constant 0 : index
    %145 = memref.load %arg1[%c2_44, %c0_45] : memref<3x11xf32, #tpu.memory_space<smem>>
    %c2_46 = arith.constant 2 : index
    %c1_47 = arith.constant 1 : index
    %146 = memref.load %arg1[%c2_46, %c1_47] : memref<3x11xf32, #tpu.memory_space<smem>>
    %c2_48 = arith.constant 2 : index
    %c2_49 = arith.constant 2 : index
    %147 = memref.load %arg1[%c2_48, %c2_49] : memref<3x11xf32, #tpu.memory_space<smem>>
    %c2_50 = arith.constant 2 : index
    %c3_51 = arith.constant 3 : index
    %148 = memref.load %arg1[%c2_50, %c3_51] : memref<3x11xf32, #tpu.memory_space<smem>>
    %c2_52 = arith.constant 2 : index
    %c4_53 = arith.constant 4 : index
    %149 = memref.load %arg1[%c2_52, %c4_53] : memref<3x11xf32, #tpu.memory_space<smem>>
    %c2_54 = arith.constant 2 : index
    %c5_55 = arith.constant 5 : index
    %150 = memref.load %arg1[%c2_54, %c5_55] : memref<3x11xf32, #tpu.memory_space<smem>>
    %c2_56 = arith.constant 2 : index
    %c6_57 = arith.constant 6 : index
    %151 = memref.load %arg1[%c2_56, %c6_57] : memref<3x11xf32, #tpu.memory_space<smem>>
    %c2_58 = arith.constant 2 : index
    %c7_59 = arith.constant 7 : index
    %152 = memref.load %arg1[%c2_58, %c7_59] : memref<3x11xf32, #tpu.memory_space<smem>>
    %c2_60 = arith.constant 2 : index
    %c8_61 = arith.constant 8 : index
    %153 = memref.load %arg1[%c2_60, %c8_61] : memref<3x11xf32, #tpu.memory_space<smem>>
    %c2_62 = arith.constant 2 : index
    %c9_63 = arith.constant 9 : index
    %154 = memref.load %arg1[%c2_62, %c9_63] : memref<3x11xf32, #tpu.memory_space<smem>>
    %c2_64 = arith.constant 2 : index
    %c10_65 = arith.constant 10 : index
    %155 = memref.load %arg1[%c2_64, %c10_65] : memref<3x11xf32, #tpu.memory_space<smem>>
    %156 = vector.broadcast %145 : f32 to vector<16x128xf32>
    %157 = arith.mulf %156, %3 : vector<16x128xf32>
    %158 = vector.broadcast %147 : f32 to vector<16x128xf32>
    %159 = arith.mulf %158, %6 : vector<16x128xf32>
    %160 = arith.addf %157, %159 : vector<16x128xf32>
    %161 = vector.broadcast %146 : f32 to vector<16x128xf32>
    %162 = arith.mulf %161, %3 : vector<16x128xf32>
    %163 = vector.broadcast %148 : f32 to vector<16x128xf32>
    %164 = arith.mulf %163, %6 : vector<16x128xf32>
    %165 = arith.addf %162, %164 : vector<16x128xf32>
    %166 = vector.broadcast %149 : f32 to vector<16x128xf32>
    %167 = arith.mulf %166, %3 : vector<16x128xf32>
    %168 = vector.broadcast %151 : f32 to vector<16x128xf32>
    %169 = arith.mulf %168, %6 : vector<16x128xf32>
    %170 = arith.addf %167, %169 : vector<16x128xf32>
    %171 = vector.broadcast %150 : f32 to vector<16x128xf32>
    %172 = arith.mulf %171, %3 : vector<16x128xf32>
    %173 = vector.broadcast %152 : f32 to vector<16x128xf32>
    %174 = arith.mulf %173, %6 : vector<16x128xf32>
    %175 = arith.addf %172, %174 : vector<16x128xf32>
    %176 = arith.mulf %3, %160 : vector<16x128xf32>
    %177 = arith.mulf %6, %170 : vector<16x128xf32>
    %178 = arith.subf %176, %177 : vector<16x128xf32>
    %179 = arith.mulf %3, %165 : vector<16x128xf32>
    %180 = arith.mulf %6, %175 : vector<16x128xf32>
    %181 = arith.subf %179, %180 : vector<16x128xf32>
    %182 = arith.mulf %6, %160 : vector<16x128xf32>
    %183 = arith.mulf %3, %170 : vector<16x128xf32>
    %184 = arith.addf %182, %183 : vector<16x128xf32>
    %185 = arith.mulf %6, %165 : vector<16x128xf32>
    %186 = arith.mulf %3, %175 : vector<16x128xf32>
    %187 = arith.addf %185, %186 : vector<16x128xf32>
    %188 = arith.mulf %178, %178 : vector<16x128xf32>
    %189 = arith.mulf %181, %181 : vector<16x128xf32>
    %190 = arith.addf %188, %189 : vector<16x128xf32>
    %191 = arith.mulf %184, %184 : vector<16x128xf32>
    %192 = arith.mulf %187, %187 : vector<16x128xf32>
    %193 = arith.addf %191, %192 : vector<16x128xf32>
    %194 = arith.subf %190, %193 : vector<16x128xf32>
    %195 = arith.mulf %178, %184 : vector<16x128xf32>
    %196 = arith.mulf %181, %187 : vector<16x128xf32>
    %197 = arith.addf %195, %196 : vector<16x128xf32>
    %198 = arith.mulf %178, %187 : vector<16x128xf32>
    %199 = arith.mulf %181, %184 : vector<16x128xf32>
    %200 = arith.subf %198, %199 : vector<16x128xf32>
    %201 = vector.broadcast %153 : f32 to vector<16x128xf32>
    %202 = arith.mulf %201, %194 : vector<16x128xf32>
    %203 = vector.broadcast %154 : f32 to vector<16x128xf32>
    %204 = arith.mulf %203, %197 : vector<16x128xf32>
    %205 = arith.addf %202, %204 : vector<16x128xf32>
    %206 = vector.broadcast %155 : f32 to vector<16x128xf32>
    %207 = arith.mulf %206, %200 : vector<16x128xf32>
    %208 = arith.subf %205, %207 : vector<16x128xf32>
    %cst_66 = arith.constant 5.000000e-01 : f32
    %209 = vector.broadcast %cst_66 : f32 to vector<16x128xf32>
    %210 = arith.addf %208, %209 : vector<16x128xf32>
    %c2_67 = arith.constant 2 : index
    %c0_68 = arith.constant 0 : index
    %c0_69 = arith.constant 0 : index
    %211 = vector.load %arg3[%c2_67, %c0_68, %c0_69] : memref<3x16x128xf32, #tpu.memory_space<vmem>>, vector<1x16x128xf32>
    %212 = vector.shape_cast %211 : vector<1x16x128xf32> to vector<16x128xf32>
    %213 = vector.shape_cast %210 : vector<16x128xf32> to vector<1x16x128xf32>
    tpu.vector_store %arg3[%c2_67, %c0_68, %c0_69], %213 {strides = array<i32>} : memref<3x16x128xf32, #tpu.memory_space<vmem>>, vector<1x16x128xf32>,
    return
  }
  func.func @transform_0(%arg0: i32) -> (i32, i32) {
    %c0_i32 = arith.constant 0 : i32
    %c0_i32_0 = arith.constant 0 : i32
    %c0_i32_1 = arith.constant 0 : i32
    return %c0_i32, %c0_i32_0 : i32, i32
  }
  func.func @transform_1(%arg0: i32) -> (i32, i32) {
    %c0_i32 = arith.constant 0 : i32
    %c0_i32_0 = arith.constant 0 : i32
    return %arg0, %c0_i32 : i32, i32
  }
  func.func @transform_2(%arg0: i32) -> (i32, i32, i32) {
    %c0_i32 = arith.constant 0 : i32
    %c0_i32_0 = arith.constant 0 : i32
    %c0_i32_1 = arith.constant 0 : i32
    return %c0_i32, %arg0, %c0_i32_0 : i32, i32, i32
  }
}

</mosaic_0001>

<llo_original>
// kernel: tpu_custom_call.1
$region0: #{tpu_custom_call.1}
  #allocation0 [shape = 'u32[]', space=smem, size = 0x4, offset = 0x4, fixed_abs, tag = 'smem constant byte address 0x4 - core index']
  #allocation1 [shape = 'u32[144,128]{1,0:T(1,128)}', space=vmem, size = 0x12000, scoped, tag = 'internal scratch']
  %s0 = inlined_call_operand.hbm [shape: f32[3,11], index: 0, kind: input, shape index: {}]
  %s1 = inlined_call_operand.hbm [shape: f32[16,128], index: 1, kind: input, shape index: {}]
  %s2 = inlined_call_operand.hbm [shape: f32[3,16,128], index: 2, kind: output, shape index: {}]
  %s3 = sld [smem:[#allocation0]]
  $region26: #{tpu_custom_call.1} parent=0
    _
  %s5 = ssub.s32 1, %s3
  %s6 = scalar_select 0, %s5, %s3
  $region1: #{tpu_custom_call.1} parent=0
    #allocation2 [shape = 'u8[2048]{0}', space=smem, size = 0x800, scoped, tag = 'input window, operand 0, single buffered']
    #allocation3 [shape = 's32[1]{0}', space=sflag, size = 0x4, scoped, tag = 'scoped memory for tpu_custom_call.1']
    #allocation4 [shape = 's32[1]{0}', space=sflag, size = 0x4, scoped, tag = 'scoped memory for tpu_custom_call.1']
    #allocation5 [shape = 's32[1]{0}', space=sflag, size = 0x4, scoped, tag = 'scoped memory for tpu_custom_call.1']
    #allocation6 [shape = 'u8[8192]{0}', space=vmem, size = 0x2000, scoped, tag = 'input window, operand 1, single buffered']
    #allocation7 [shape = 'u8[24576]{0}', space=vmem, size = 0x6000, scoped, tag = 'output window, operand 0, single buffered']
    %7 = vsyncpa [#allocation5], 0
    %8 = vsyncpa [#allocation3], 0
    %9 = vsyncpa [#allocation4], 0
    // Predicated region
    $region2: #{tpu_custom_call.1} parent=1 // pred_check
      _
    $region3: #{tpu_custom_call.1} parent=1 // pred_check_branch
      %11 = sbr.rel (0) target = $region5
    $region4: #{tpu_custom_call.1} parent=1 // pred_region
      %s13 = ssub.s32 64, 64
      %14 = vsyncadd [#allocation5], %s13
      %17 = dma.hbm_to_smem %s0, 64, [#allocation2], [#allocation5]
    $region5: #{tpu_custom_call.1} parent=1 // pred_fallthru
      _
    // Predicated region
    $region6: #{tpu_custom_call.1} parent=1 // pred_check
      _
    $region7: #{tpu_custom_call.1} parent=1 // pred_check_branch
      %19 = sbr.rel (0) target = $region9
    $region8: #{tpu_custom_call.1} parent=1 // pred_region
      %s21 = ssub.s32 256, 256
      %22 = vsyncadd [#allocation3], %s21
      %s23 = sshll.u32 [#allocation6], 4
      %s24 = int_to_ptr.vmem [resolvable:$true] %s23
      %29 = dma.hbm_to_vmem [thread:$0]  %s1, 256, %s24, [#allocation3], 128, 128, 8
    $region9: #{tpu_custom_call.1} parent=1 // pred_fallthru
      _
    // Predicated region
    $region10: #{tpu_custom_call.1} parent=1 // pred_check
      _
    $region11: #{tpu_custom_call.1} parent=1 // pred_check_branch
      %31 = sbr.rel (0) target = $region13
    $region12: #{tpu_custom_call.1} parent=1 // pred_region
      %32 = dma.done [#allocation5], 64
    $region13: #{tpu_custom_call.1} parent=1 // pred_fallthru
      _
    // Predicated region
    $region14: #{tpu_custom_call.1} parent=1 // pred_check
      _
    $region15: #{tpu_custom_call.1} parent=1 // pred_check_branch
      %34 = sbr.rel (0) target = $region17
    $region16: #{tpu_custom_call.1} parent=1 // pred_region
      %35 = dma.done [#allocation3], 256
    $region17: #{tpu_custom_call.1} parent=1 // pred_fallthru
      _
    %36 = sfence
    %v37 = vld [vmem:[#allocation6] sm:$0xff]
    %v38 = vld [vmem:[#allocation6 + $0x8] sm:$0xff]
    %v39 = vmul.f32 %v37, 0.5
    %v40 = vmul.f32 %v38, 0.5
    %v41 = vand.u32 2147483647, %v39
    %vm42 = vcmp.le.f32.partialorder %v41, 0.7853982
    %vm43 = vcmp.lt.s32.totalorder %v39, 0
    %v44 = vand.u32 %v39, 2139095040
    %v45 = vshrl.u32 %v44, 23
    %v46 = vsub.s32 %v45, 127
    %v47 = vand.u32 2147483647, %v39
    %v48 = vand.u32 %v47, 8388607
    %v49 = vor.u32 %v48, 8388608
    %v50 = vsub.s32 0, %v49
    %v51 = vadd.s32 %v46, 1
    %vm52 = vcmp.gt.s32.totalorder %v51, 0
    %v53 = vsel %vm52, %v51, 0
    %v54 = vshrl.u32 %v53, 5
    %v55 = vand.u32 %v53, 31
    %v56 = vsub.s32 32, %v55
    %v57 = vshrl.u32 683565275, %v56
    %v58 = vshll.u32 683565275, %v55
    %v59 = vshrl.u32 2475754826, %v56
    %v60 = vor.u32 %v58, %v59
    %v61 = vshll.u32 2475754826, %v55
    %v62 = vshrl.u32 2131351028, %v56
    %v63 = vor.u32 %v61, %v62
    %v64 = vshll.u32 2131351028, %v55
    %v65 = vshrl.u32 2102212464, %v56
    %v66 = vor.u32 %v64, %v65
    %v67 = vshll.u32 2102212464, %v55
    %v68 = vshrl.u32 920167782, %v56
    %v69 = vor.u32 %v67, %v68
    %v70 = vshll.u32 920167782, %v55
    %v71 = vshrl.u32 1326507024, %v56
    %v72 = vor.u32 %v70, %v71
    %vm73 = vcmp.lt.s32.totalorder %v54, 1
    %vm74 = vcmp.lt.s32.totalorder %v54, 2
    %vm75 = vcmp.lt.s32.totalorder %v54, 3
    %vm76 = vcmp.lt.s32.totalorder %v54, 4
    %v77 = vsel %vm73, %v57, %v60
    %v78 = vsel %vm76, %v66, 2102212464
    %v79 = vsel %vm75, %v63, %v78
    %v80 = vsel %vm74, %v77, %v79
    %v81 = vsel %vm73, %v60, %v63
    %v82 = vsel %vm76, %v69, 920167782
    %v83 = vsel %vm75, %v66, %v82
    %v84 = vsel %vm74, %v81, %v83
    %v85 = vsel %vm73, %v63, %v66
    %v86 = vsel %vm76, %v72, 1326507024
    %v87 = vsel %vm75, %v69, %v86
    %v88 = vsel %vm74, %v85, %v87
    %v89 = vshll.u32 %v49, 8
    %v90 = vmul.u32.u64.compose %v89, %v88
    %v91 = vextract.low.u32 %v90
    %v92 = vextract.high.u32 %v90
    %v93 = vmul.u32.u64.compose %v89, %v84
    %v94 = vextract.low.u32 %v93
    %v95 = vextract.high.u32 %v93
    %v96 = vmul.u32 %v89, %v80
    %v97 = vadd.s32 %v92, %v94
    %vm98 = vc.u32 %v92, %v94
    %v99 = vadd.s32 %v95, 1
    %v100 = vsel %vm98, %v99, %v95
    %v101 = vadd.s32 %v96, %v100
    %v102 = vadd.s32 %v101, 536870912
    %v103 = vshrl.u32 %v102, 30
    %v104 = vshll.u32 %v103, 30
    %v105 = vsub.s32 %v101, %v104
    %vm106 = vcmp.lt.s32.totalorder %v105, 0
    %v107 = vsub.s32 0, %v105
    %v108 = vsel %vm106, %v107, %v105
    %v109 = vclz %v108
    %v110 = vsub.s32 %v109, 2
    %vm111 = vcmp.gt.s32.totalorder 0, %v110
    %v112 = vsel %vm111, 0, %v110
    %v113 = vsub.s32 32, %v112
    %v114 = vshll.u32 %v105, %v112
    %v115 = vshrl.u32 %v97, %v113
    %v116 = vor.u32 %v114, %v115
    %v117 = vsub.s32 4294967266, %v112
    %v118 = vadd.s32 %v117, 127
    %v119 = vshll.u32 %v118, 23
    %v120 = vor.u32 4788187, %v119
    %v121 = vand.u32 2147483647, %v120
    %v123 = vcvt.s32.f32 %v116
    %v124 = vmul.f32 %v123, %v121
    %v125 = vxor.u32 %v124, 2147483648
    %v126 = vsel %vm43, %v125, %v124
    %v127 = vsub.s32 4, %v103
    %v128 = vsel %vm43, %v127, %v103
    %v129 = vsel %vm42, %v39, %v126
    %v130 = vsel %vm42, 0, %v128
    %v131 = vcosq.f32.pop %v129
    %v132 = vsinq.f32.pop %v129
    %vm133 = vweird.f32 %v39
    %v134 = vand.u32 %v130, 3
    %vm135 = vcmp.lt.s32.totalorder %v134, 2
    %vm136 = vcmp.eq.s32.totalorder %v134, 0
    %v137 = vxor.u32 %v132, 2147483648
    %v138 = vsel %vm136, %v131, %v137
    %vm139 = vcmp.eq.s32.totalorder %v134, 2
    %v140 = vxor.u32 %v131, 2147483648
    %v141 = vsel %vm139, %v140, %v132
    %v142 = vsel %vm135, %v138, %v141
    %v143 = vsel %vm133, nan, %v142
    %v144 = vand.u32 2147483647, %v40
    %vm145 = vcmp.le.f32.partialorder %v144, 0.7853982
    %vm146 = vcmp.lt.s32.totalorder %v40, 0
    %v147 = vand.u32 %v40, 2139095040
    %v148 = vshrl.u32 %v147, 23
    %v149 = vsub.s32 %v148, 127
    %v150 = vand.u32 2147483647, %v40
    %v151 = vand.u32 %v150, 8388607
    %v152 = vor.u32 %v151, 8388608
    %v153 = vsub.s32 0, %v152
    %v154 = vadd.s32 %v149, 1
    %vm155 = vcmp.gt.s32.totalorder %v154, 0
    %v156 = vsel %vm155, %v154, 0
    %v157 = vshrl.u32 %v156, 5
    %v158 = vand.u32 %v156, 31
    %v159 = vsub.s32 32, %v158
    %v160 = vshrl.u32 683565275, %v159
    %v161 = vshll.u32 683565275, %v158
    %v162 = vshrl.u32 2475754826, %v159
    %v163 = vor.u32 %v161, %v162
    %v164 = vshll.u32 2475754826, %v158
    %v165 = vshrl.u32 2131351028, %v159
    %v166 = vor.u32 %v164, %v165
    %v167 = vshll.u32 2131351028, %v158
    %v168 = vshrl.u32 2102212464, %v159
    %v169 = vor.u32 %v167, %v168
    %v170 = vshll.u32 2102212464, %v158
    %v171 = vshrl.u32 920167782, %v159
    %v172 = vor.u32 %v170, %v171
    %v173 = vshll.u32 920167782, %v158
    %v174 = vshrl.u32 1326507024, %v159
    %v175 = vor.u32 %v173, %v174
    %vm176 = vcmp.lt.s32.totalorder %v157, 1
    %vm177 = vcmp.lt.s32.totalorder %v157, 2
    %vm178 = vcmp.lt.s32.totalorder %v157, 3
    %vm179 = vcmp.lt.s32.totalorder %v157, 4
    %v180 = vsel %vm176, %v160, %v163
    %v181 = vsel %vm179, %v169, 2102212464
    %v182 = vsel %vm178, %v166, %v181
    %v183 = vsel %vm177, %v180, %v182
    %v184 = vsel %vm176, %v163, %v166
    %v185 = vsel %vm179, %v172, 920167782
    %v186 = vsel %vm178, %v169, %v185
    %v187 = vsel %vm177, %v184, %v186
    %v188 = vsel %vm176, %v166, %v169
    %v189 = vsel %vm179, %v175, 1326507024
    %v190 = vsel %vm178, %v172, %v189
    %v191 = vsel %vm177, %v188, %v190
    %v192 = vshll.u32 %v152, 8
    %v193 = vmul.u32.u64.compose %v192, %v191
    %v194 = vextract.low.u32 %v193
    %v195 = vextract.high.u32 %v193
    %v196 = vmul.u32.u64.compose %v192, %v187
    %v197 = vextract.low.u32 %v196
    %v198 = vextract.high.u32 %v196
    %v199 = vmul.u32 %v192, %v183
    %v200 = vadd.s32 %v195, %v197
    %vm201 = vc.u32 %v195, %v197
    %v202 = vadd.s32 %v198, 1
    %v203 = vsel %vm201, %v202, %v198
    %v204 = vadd.s32 %v199, %v203
    %v205 = vadd.s32 %v204, 536870912
    %v206 = vshrl.u32 %v205, 30
    %v207 = vshll.u32 %v206, 30
    %v208 = vsub.s32 %v204, %v207
    %vm209 = vcmp.lt.s32.totalorder %v208, 0
    %v210 = vsub.s32 0, %v208
    %v211 = vsel %vm209, %v210, %v208
    %v212 = vclz %v211
    %v213 = vsub.s32 %v212, 2
    %vm214 = vcmp.gt.s32.totalorder 0, %v213
    %v215 = vsel %vm214, 0, %v213
    %v216 = vsub.s32 32, %v215
    %v217 = vshll.u32 %v208, %v215
    %v218 = vshrl.u32 %v200, %v216
    %v219 = vor.u32 %v217, %v218
    %v220 = vsub.s32 4294967266, %v215
    %v221 = vadd.s32 %v220, 127
    %v222 = vshll.u32 %v221, 23
    %v223 = vor.u32 4788187, %v222
    %v224 = vand.u32 2147483647, %v223
    %v226 = vcvt.s32.f32 %v219
    %v227 = vmul.f32 %v226, %v224
    %v228 = vxor.u32 %v227, 2147483648
    %v229 = vsel %vm146, %v228, %v227
    %v230 = vsub.s32 4, %v206
    %v231 = vsel %vm146, %v230, %v206
    %v232 = vsel %vm145, %v40, %v229
    %v233 = vsel %vm145, 0, %v231
    %v234 = vcosq.f32.pop %v232
    %v235 = vsinq.f32.pop %v232
    %vm236 = vweird.f32 %v40
    %v237 = vand.u32 %v233, 3
    %vm238 = vcmp.lt.s32.totalorder %v237, 2
    %vm239 = vcmp.eq.s32.totalorder %v237, 0
    %v240 = vxor.u32 %v235, 2147483648
    %v241 = vsel %vm239, %v234, %v240
    %vm242 = vcmp.eq.s32.totalorder %v237, 2
    %v243 = vxor.u32 %v234, 2147483648
    %v244 = vsel %vm242, %v243, %v235
    %v245 = vsel %vm238, %v241, %v244
    %v246 = vsel %vm236, nan, %v245
    %v247 = vand.u32 2147483647, %v39
    %vm248 = vcmp.le.f32.partialorder %v247, 0.7853982
    %vm249 = vcmp.lt.s32.totalorder %v39, 0
    %v250 = vand.u32 %v39, 2139095040
    %v251 = vshrl.u32 %v250, 23
    %v252 = vsub.s32 %v251, 127
    %v253 = vand.u32 2147483647, %v39
    %v254 = vand.u32 %v253, 8388607
    %v255 = vor.u32 %v254, 8388608
    %v256 = vsub.s32 0, %v255
    %v257 = vadd.s32 %v252, 1
    %vm258 = vcmp.gt.s32.totalorder %v257, 0
    %v259 = vsel %vm258, %v257, 0
    %v260 = vshrl.u32 %v259, 5
    %v261 = vand.u32 %v259, 31
    %v262 = vsub.s32 32, %v261
    %v263 = vshrl.u32 683565275, %v262
    %v264 = vshll.u32 683565275, %v261
    %v265 = vshrl.u32 2475754826, %v262
    %v266 = vor.u32 %v264, %v265
    %v267 = vshll.u32 2475754826, %v261
    %v268 = vshrl.u32 2131351028, %v262
    %v269 = vor.u32 %v267, %v268
    %v270 = vshll.u32 2131351028, %v261
    %v271 = vshrl.u32 2102212464, %v262
    %v272 = vor.u32 %v270, %v271
    %v273 = vshll.u32 2102212464, %v261
    %v274 = vshrl.u32 920167782, %v262
    %v275 = vor.u32 %v273, %v274
    %v276 = vshll.u32 920167782, %v261
    %v277 = vshrl.u32 1326507024, %v262
    %v278 = vor.u32 %v276, %v277
    %vm279 = vcmp.lt.s32.totalorder %v260, 1
    %vm280 = vcmp.lt.s32.totalorder %v260, 2
    %vm281 = vcmp.lt.s32.totalorder %v260, 3
    %vm282 = vcmp.lt.s32.totalorder %v260, 4
    %v283 = vsel %vm279, %v263, %v266
    %v284 = vsel %vm282, %v272, 2102212464
    %v285 = vsel %vm281, %v269, %v284
    %v286 = vsel %vm280, %v283, %v285
    %v287 = vsel %vm279, %v266, %v269
    %v288 = vsel %vm282, %v275, 920167782
    %v289 = vsel %vm281, %v272, %v288
    %v290 = vsel %vm280, %v287, %v289
    %v291 = vsel %vm279, %v269, %v272
    %v292 = vsel %vm282, %v278, 1326507024
    %v293 = vsel %vm281, %v275, %v292
    %v294 = vsel %vm280, %v291, %v293
    %v295 = vshll.u32 %v255, 8
    %v296 = vmul.u32.u64.compose %v295, %v294
    %v297 = vextract.low.u32 %v296
    %v298 = vextract.high.u32 %v296
    %v299 = vmul.u32.u64.compose %v295, %v290
    %v300 = vextract.low.u32 %v299
    %v301 = vextract.high.u32 %v299
    %v302 = vmul.u32 %v295, %v286
    %v303 = vadd.s32 %v298, %v300
    %vm304 = vc.u32 %v298, %v300
    %v305 = vadd.s32 %v301, 1
    %v306 = vsel %vm304, %v305, %v301
    %v307 = vadd.s32 %v302, %v306
    %v308 = vadd.s32 %v307, 536870912
    %v309 = vshrl.u32 %v308, 30
    %v310 = vshll.u32 %v309, 30
    %v311 = vsub.s32 %v307, %v310
    %vm312 = vcmp.lt.s32.totalorder %v311, 0
    %v313 = vsub.s32 0, %v311
    %v314 = vsel %vm312, %v313, %v311
    %v315 = vclz %v314
    %v316 = vsub.s32 %v315, 2
    %vm317 = vcmp.gt.s32.totalorder 0, %v316
    %v318 = vsel %vm317, 0, %v316
    %v319 = vsub.s32 32, %v318
    %v320 = vshll.u32 %v311, %v318
    %v321 = vshrl.u32 %v303, %v319
    %v322 = vor.u32 %v320, %v321
    %v323 = vsub.s32 4294967266, %v318
    %v324 = vadd.s32 %v323, 127
    %v325 = vshll.u32 %v324, 23
    %v326 = vor.u32 4788187, %v325
    %v327 = vand.u32 2147483647, %v326
    %v329 = vcvt.s32.f32 %v322
    %v330 = vmul.f32 %v329, %v327
    %v331 = vxor.u32 %v330, 2147483648
    %v332 = vsel %vm249, %v331, %v330
    %v333 = vsub.s32 4, %v309
    %v334 = vsel %vm249, %v333, %v309
    %v335 = vsel %vm248, %v39, %v332
    %v336 = vsel %vm248, 0, %v334
    %v337 = vcosq.f32.pop %v335
    %v338 = vsinq.f32.pop %v335
    %vm339 = vweird.f32 %v39
    %v340 = vadd.s32 %v336, 3
    %v341 = vand.u32 %v340, 3
    %vm342 = vcmp.lt.s32.totalorder %v341, 2
    %vm343 = vcmp.eq.s32.totalorder %v341, 0
    %v344 = vxor.u32 %v338, 2147483648
    %v345 = vsel %vm343, %v337, %v344
    %vm346 = vcmp.eq.s32.totalorder %v341, 2
    %v347 = vxor.u32 %v337, 2147483648
    %v348 = vsel %vm346, %v347, %v338
    %v349 = vsel %vm342, %v345, %v348
    %v350 = vsel %vm339, nan, %v349
    %v351 = vand.u32 2147483647, %v40
    %vm352 = vcmp.le.f32.partialorder %v351, 0.7853982
    %vm353 = vcmp.lt.s32.totalorder %v40, 0
    %v354 = vand.u32 %v40, 2139095040
    %v355 = vshrl.u32 %v354, 23
    %v356 = vsub.s32 %v355, 127
    %v357 = vand.u32 2147483647, %v40
    %v358 = vand.u32 %v357, 8388607
    %v359 = vor.u32 %v358, 8388608
    %v360 = vsub.s32 0, %v359
    %v361 = vadd.s32 %v356, 1
    %vm362 = vcmp.gt.s32.totalorder %v361, 0
    %v363 = vsel %vm362, %v361, 0
    %v364 = vshrl.u32 %v363, 5
    %v365 = vand.u32 %v363, 31
    %v366 = vsub.s32 32, %v365
    %v367 = vshrl.u32 683565275, %v366
    %v368 = vshll.u32 683565275, %v365
    %v369 = vshrl.u32 2475754826, %v366
    %v370 = vor.u32 %v368, %v369
    %v371 = vshll.u32 2475754826, %v365
    %v372 = vshrl.u32 2131351028, %v366
    %v373 = vor.u32 %v371, %v372
    %v374 = vshll.u32 2131351028, %v365
    %v375 = vshrl.u32 2102212464, %v366
    %v376 = vor.u32 %v374, %v375
    %v377 = vshll.u32 2102212464, %v365
    %v378 = vshrl.u32 920167782, %v366
    %v379 = vor.u32 %v377, %v378
    %v380 = vshll.u32 920167782, %v365
    %v381 = vshrl.u32 1326507024, %v366
    %v382 = vor.u32 %v380, %v381
    %vm383 = vcmp.lt.s32.totalorder %v364, 1
    %vm384 = vcmp.lt.s32.totalorder %v364, 2
    %vm385 = vcmp.lt.s32.totalorder %v364, 3
    %vm386 = vcmp.lt.s32.totalorder %v364, 4
    %v387 = vsel %vm383, %v367, %v370
    %v388 = vsel %vm386, %v376, 2102212464
    %v389 = vsel %vm385, %v373, %v388
    %v390 = vsel %vm384, %v387, %v389
    %v391 = vsel %vm383, %v370, %v373
    %v392 = vsel %vm386, %v379, 920167782
    %v393 = vsel %vm385, %v376, %v392
    %v394 = vsel %vm384, %v391, %v393
    %v395 = vsel %vm383, %v373, %v376
    %v396 = vsel %vm386, %v382, 1326507024
    %v397 = vsel %vm385, %v379, %v396
    %v398 = vsel %vm384, %v395, %v397
    %v399 = vshll.u32 %v359, 8
    %v400 = vmul.u32.u64.compose %v399, %v398
    %v401 = vextract.low.u32 %v400
    %v402 = vextract.high.u32 %v400
    %v403 = vmul.u32.u64.compose %v399, %v394
    %v404 = vextract.low.u32 %v403
    %v405 = vextract.high.u32 %v403
    %v406 = vmul.u32 %v399, %v390
    %v407 = vadd.s32 %v402, %v404
    %vm408 = vc.u32 %v402, %v404
    %v409 = vadd.s32 %v405, 1
    %v410 = vsel %vm408, %v409, %v405
    %v411 = vadd.s32 %v406, %v410
    %v412 = vadd.s32 %v411, 536870912
    %v413 = vshrl.u32 %v412, 30
    %v414 = vshll.u32 %v413, 30
    %v415 = vsub.s32 %v411, %v414
    %vm416 = vcmp.lt.s32.totalorder %v415, 0
    %v417 = vsub.s32 0, %v415
    %v418 = vsel %vm416, %v417, %v415
    %v419 = vclz %v418
    %v420 = vsub.s32 %v419, 2
    %vm421 = vcmp.gt.s32.totalorder 0, %v420
    %v422 = vsel %vm421, 0, %v420
    %v423 = vsub.s32 32, %v422
    %v424 = vshll.u32 %v415, %v422
    %v425 = vshrl.u32 %v407, %v423
    %v426 = vor.u32 %v424, %v425
    %v427 = vsub.s32 4294967266, %v422
    %v428 = vadd.s32 %v427, 127
    %v429 = vshll.u32 %v428, 23
    %v430 = vor.u32 4788187, %v429
    %v431 = vand.u32 2147483647, %v430
    %v433 = vcvt.s32.f32 %v426
    %v434 = vmul.f32 %v433, %v431
    %v435 = vxor.u32 %v434, 2147483648
    %v436 = vsel %vm353, %v435, %v434
    %v437 = vsub.s32 4, %v413
    %v438 = vsel %vm353, %v437, %v413
    %v439 = vsel %vm352, %v40, %v436
    %v440 = vsel %vm352, 0, %v438
    %v441 = vcosq.f32.pop %v439
    %v442 = vsinq.f32.pop %v439
    %vm443 = vweird.f32 %v40
    %v444 = vadd.s32 %v440, 3
    %v445 = vand.u32 %v444, 3
    %vm446 = vcmp.lt.s32.totalorder %v445, 2
    %vm447 = vcmp.eq.s32.totalorder %v445, 0
    %v448 = vxor.u32 %v442, 2147483648
    %v449 = vsel %vm447, %v441, %v448
    %vm450 = vcmp.eq.s32.totalorder %v445, 2
    %v451 = vxor.u32 %v441, 2147483648
    %v452 = vsel %vm450, %v451, %v442
    %v453 = vsel %vm446, %v449, %v452
    %v454 = vsel %vm443, nan, %v453
    %s455 = sld [smem:[#allocation2]]
    %s456 = sld [smem:[#allocation2 + $0x1]]
    %s457 = sld [smem:[#allocation2 + $0x2]]
    %s458 = sld [smem:[#allocation2 + $0x3]]
    %s459 = sld [smem:[#allocation2 + $0x4]]
    %s460 = sld [smem:[#allocation2 + $0x5]]
    %s461 = sld [smem:[#allocation2 + $0x6]]
    %s462 = sld [smem:[#allocation2 + $0x7]]
    %s463 = sld [smem:[#allocation2 + $0x8]]
    %s464 = sld [smem:[#allocation2 + $0x9]]
    %s465 = sld [smem:[#allocation2 + $0xa]]
    %v466 = vstv %s455
    %v467 = vmul.f32 %v466, %v143
    %v468 = vmul.f32 %v466, %v246
    %v469 = vstv %s457
    %v470 = vmul.f32 %v469, %v350
    %v471 = vmul.f32 %v469, %v454
    %v472 = vadd.f32 %v467, %v470
    %v473 = vadd.f32 %v468, %v471
    %v474 = vstv %s456
    %v475 = vmul.f32 %v474, %v143
    %v476 = vmul.f32 %v474, %v246
    %v477 = vstv %s458
    %v478 = vmul.f32 %v477, %v350
    %v479 = vmul.f32 %v477, %v454
    %v480 = vadd.f32 %v475, %v478
    %v481 = vadd.f32 %v476, %v479
    %v482 = vstv %s459
    %v483 = vmul.f32 %v482, %v143
    %v484 = vmul.f32 %v482, %v246
    %v485 = vstv %s461
    %v486 = vmul.f32 %v485, %v350
    %v487 = vmul.f32 %v485, %v454
    %v488 = vadd.f32 %v483, %v486
    %v489 = vadd.f32 %v484, %v487
    %v490 = vstv %s460
    %v491 = vmul.f32 %v490, %v143
    %v492 = vmul.f32 %v490, %v246
    %v493 = vstv %s462
    %v494 = vmul.f32 %v493, %v350
    %v495 = vmul.f32 %v493, %v454
    %v496 = vadd.f32 %v491, %v494
    %v497 = vadd.f32 %v492, %v495
    %v498 = vmul.f32 %v143, %v472
    %v499 = vmul.f32 %v246, %v473
    %v500 = vmul.f32 %v350, %v488
    %v501 = vmul.f32 %v454, %v489
    %v502 = vsub.f32 %v498, %v500
    %v503 = vsub.f32 %v499, %v501
    %v504 = vmul.f32 %v143, %v480
    %v505 = vmul.f32 %v246, %v481
    %v506 = vmul.f32 %v350, %v496
    %v507 = vmul.f32 %v454, %v497
    %v508 = vsub.f32 %v504, %v506
    %v509 = vsub.f32 %v505, %v507
    %v510 = vmul.f32 %v350, %v472
    %v511 = vmul.f32 %v454, %v473
    %v512 = vmul.f32 %v143, %v488
    %v513 = vmul.f32 %v246, %v489
    %v514 = vadd.f32 %v510, %v512
    %v515 = vadd.f32 %v511, %v513
    %v516 = vmul.f32 %v350, %v480
    %v517 = vmul.f32 %v454, %v481
    %v518 = vmul.f32 %v143, %v496
    %v519 = vmul.f32 %v246, %v497
    %v520 = vadd.f32 %v516, %v518
    %v521 = vadd.f32 %v517, %v519
    %v522 = vmul.f32 %v502, %v502
    %v523 = vmul.f32 %v503, %v503
    %v524 = vmul.f32 %v508, %v508
    %v525 = vmul.f32 %v509, %v509
    %v526 = vadd.f32 %v522, %v524
    %v527 = vadd.f32 %v523, %v525
    %v528 = vmul.f32 %v514, %v514
    %v529 = vmul.f32 %v515, %v515
    %v530 = vmul.f32 %v520, %v520
    %v531 = vmul.f32 %v521, %v521
    %v532 = vadd.f32 %v528, %v530
    %v533 = vadd.f32 %v529, %v531
    %v534 = vsub.f32 %v526, %v532
    %v535 = vsub.f32 %v527, %v533
    %v536 = vmul.f32 %v502, %v514
    %v537 = vmul.f32 %v503, %v515
    %v538 = vmul.f32 %v508, %v520
    %v539 = vmul.f32 %v509, %v521
    %v540 = vadd.f32 %v536, %v538
    %v541 = vadd.f32 %v537, %v539
    %v542 = vmul.f32 %v502, %v520
    %v543 = vmul.f32 %v503, %v521
    %v544 = vmul.f32 %v508, %v514
    %v545 = vmul.f32 %v509, %v515
    %v546 = vsub.f32 %v542, %v544
    %v547 = vsub.f32 %v543, %v545
    %v548 = vstv %s463
    %v549 = vmul.f32 %v548, %v534
    %v550 = vmul.f32 %v548, %v535
    %v551 = vstv %s464
    %v552 = vmul.f32 %v551, %v540
    %v553 = vmul.f32 %v551, %v541
    %v554 = vadd.f32 %v549, %v552
    %v555 = vadd.f32 %v550, %v553
    %v556 = vstv %s465
    %v557 = vmul.f32 %v556, %v546
    %v558 = vmul.f32 %v556, %v547
    %v559 = vsub.f32 %v554, %v557
    %v560 = vsub.f32 %v555, %v558
    %v561 = vadd.f32 %v559, 0.5
    %v562 = vadd.f32 %v560, 0.5
    %563 = vst [vmem:[#allocation7] sm:$0xff] %v561
    %564 = vst [vmem:[#allocation7 + $0x8] sm:$0xff] %v562
    %s565 = sld [smem:[#allocation2 + $0x80]]
    %s566 = sld [smem:[#allocation2 + $0x81]]
    %s567 = sld [smem:[#allocation2 + $0x82]]
    %s568 = sld [smem:[#allocation2 + $0x83]]
    %s569 = sld [smem:[#allocation2 + $0x84]]
    %s570 = sld [smem:[#allocation2 + $0x85]]
    %s571 = sld [smem:[#allocation2 + $0x86]]
    %s572 = sld [smem:[#allocation2 + $0x87]]
    %s573 = sld [smem:[#allocation2 + $0x88]]
    %s574 = sld [smem:[#allocation2 + $0x89]]
    %s575 = sld [smem:[#allocation2 + $0x8a]]
    %v576 = vstv %s565
    %v577 = vmul.f32 %v576, %v143
    %v578 = vmul.f32 %v576, %v246
    %v579 = vstv %s567
    %v580 = vmul.f32 %v579, %v350
    %v581 = vmul.f32 %v579, %v454
    %v582 = vadd.f32 %v577, %v580
    %v583 = vadd.f32 %v578, %v581
    %v584 = vstv %s566
    %v585 = vmul.f32 %v584, %v143
    %v586 = vmul.f32 %v584, %v246
    %v587 = vstv %s568
    %v588 = vmul.f32 %v587, %v350
    %v589 = vmul.f32 %v587, %v454
    %v590 = vadd.f32 %v585, %v588
    %v591 = vadd.f32 %v586, %v589
    %v592 = vstv %s569
    %v593 = vmul.f32 %v592, %v143
    %v594 = vmul.f32 %v592, %v246
    %v595 = vstv %s571
    %v596 = vmul.f32 %v595, %v350
    %v597 = vmul.f32 %v595, %v454
    %v598 = vadd.f32 %v593, %v596
    %v599 = vadd.f32 %v594, %v597
    %v600 = vstv %s570
    %v601 = vmul.f32 %v600, %v143
    %v602 = vmul.f32 %v600, %v246
    %v603 = vstv %s572
    %v604 = vmul.f32 %v603, %v350
    %v605 = vmul.f32 %v603, %v454
    %v606 = vadd.f32 %v601, %v604
    %v607 = vadd.f32 %v602, %v605
    %v608 = vmul.f32 %v143, %v582
    %v609 = vmul.f32 %v246, %v583
    %v610 = vmul.f32 %v350, %v598
    %v611 = vmul.f32 %v454, %v599
    %v612 = vsub.f32 %v608, %v610
    %v613 = vsub.f32 %v609, %v611
    %v614 = vmul.f32 %v143, %v590
    %v615 = vmul.f32 %v246, %v591
    %v616 = vmul.f32 %v350, %v606
    %v617 = vmul.f32 %v454, %v607
    %v618 = vsub.f32 %v614, %v616
    %v619 = vsub.f32 %v615, %v617
    %v620 = vmul.f32 %v350, %v582
    %v621 = vmul.f32 %v454, %v583
    %v622 = vmul.f32 %v143, %v598
    %v623 = vmul.f32 %v246, %v599
    %v624 = vadd.f32 %v620, %v622
    %v625 = vadd.f32 %v621, %v623
    %v626 = vmul.f32 %v350, %v590
    %v627 = vmul.f32 %v454, %v591
    %v628 = vmul.f32 %v143, %v606
    %v629 = vmul.f32 %v246, %v607
    %v630 = vadd.f32 %v626, %v628
    %v631 = vadd.f32 %v627, %v629
    %v632 = vmul.f32 %v612, %v612
    %v633 = vmul.f32 %v613, %v613
    %v634 = vmul.f32 %v618, %v618
    %v635 = vmul.f32 %v619, %v619
    %v636 = vadd.f32 %v632, %v634
    %v637 = vadd.f32 %v633, %v635
    %v638 = vmul.f32 %v624, %v624
    %v639 = vmul.f32 %v625, %v625
    %v640 = vmul.f32 %v630, %v630
    %v641 = vmul.f32 %v631, %v631
    %v642 = vadd.f32 %v638, %v640
    %v643 = vadd.f32 %v639, %v641
    %v644 = vsub.f32 %v636, %v642
    %v645 = vsub.f32 %v637, %v643
    %v646 = vmul.f32 %v612, %v624
    %v647 = vmul.f32 %v613, %v625
    %v648 = vmul.f32 %v618, %v630
    %v649 = vmul.f32 %v619, %v631
    %v650 = vadd.f32 %v646, %v648
    %v651 = vadd.f32 %v647, %v649
    %v652 = vmul.f32 %v612, %v630
    %v653 = vmul.f32 %v613, %v631
    %v654 = vmul.f32 %v618, %v624
    %v655 = vmul.f32 %v619, %v625
    %v656 = vsub.f32 %v652, %v654
    %v657 = vsub.f32 %v653, %v655
    %v658 = vstv %s573
    %v659 = vmul.f32 %v658, %v644
    %v660 = vmul.f32 %v658, %v645
    %v661 = vstv %s574
    %v662 = vmul.f32 %v661, %v650
    %v663 = vmul.f32 %v661, %v651
    %v664 = vadd.f32 %v659, %v662
    %v665 = vadd.f32 %v660, %v663
    %v666 = vstv %s575
    %v667 = vmul.f32 %v666, %v656
    %v668 = vmul.f32 %v666, %v657
    %v669 = vsub.f32 %v664, %v667
    %v670 = vsub.f32 %v665, %v668
    %v671 = vadd.f32 %v669, 0.5
    %v672 = vadd.f32 %v670, 0.5
    %s673 = scalar_lea.vmem [#allocation7], 16
    %674 = vst [vmem:[%s673] sm:$0xff] %v671
    %675 = vst [vmem:[%s673 + $0x8] sm:$0xff] %v672
    %s676 = sld [smem:[#allocation2 + $0x100]]
    %s677 = sld [smem:[#allocation2 + $0x101]]
    %s678 = sld [smem:[#allocation2 + $0x102]]
    %s679 = sld [smem:[#allocation2 + $0x103]]
    %s680 = sld [smem:[#allocation2 + $0x104]]
    %s681 = sld [smem:[#allocation2 + $0x105]]
    %s682 = sld [smem:[#allocation2 + $0x106]]
    %s683 = sld [smem:[#allocation2 + $0x107]]
    %s684 = sld [smem:[#allocation2 + $0x108]]
    %s685 = sld [smem:[#allocation2 + $0x109]]
    %s686 = sld [smem:[#allocation2 + $0x10a]]
    %v687 = vstv %s676
    %v688 = vmul.f32 %v687, %v143
    %v689 = vmul.f32 %v687, %v246
    %v690 = vstv %s678
    %v691 = vmul.f32 %v690, %v350
    %v692 = vmul.f32 %v690, %v454
    %v693 = vadd.f32 %v688, %v691
    %v694 = vadd.f32 %v689, %v692
    %v695 = vstv %s677
    %v696 = vmul.f32 %v695, %v143
    %v697 = vmul.f32 %v695, %v246
    %v698 = vstv %s679
    %v699 = vmul.f32 %v698, %v350
    %v700 = vmul.f32 %v698, %v454
    %v701 = vadd.f32 %v696, %v699
    %v702 = vadd.f32 %v697, %v700
    %v703 = vstv %s680
    %v704 = vmul.f32 %v703, %v143
    %v705 = vmul.f32 %v703, %v246
    %v706 = vstv %s682
    %v707 = vmul.f32 %v706, %v350
    %v708 = vmul.f32 %v706, %v454
    %v709 = vadd.f32 %v704, %v707
    %v710 = vadd.f32 %v705, %v708
    %v711 = vstv %s681
    %v712 = vmul.f32 %v711, %v143
    %v713 = vmul.f32 %v711, %v246
    %v714 = vstv %s683
    %v715 = vmul.f32 %v714, %v350
    %v716 = vmul.f32 %v714, %v454
    %v717 = vadd.f32 %v712, %v715
    %v718 = vadd.f32 %v713, %v716
    %v719 = vmul.f32 %v143, %v693
    %v720 = vmul.f32 %v246, %v694
    %v721 = vmul.f32 %v350, %v709
    %v722 = vmul.f32 %v454, %v710
    %v723 = vsub.f32 %v719, %v721
    %v724 = vsub.f32 %v720, %v722
    %v725 = vmul.f32 %v143, %v701
    %v726 = vmul.f32 %v246, %v702
    %v727 = vmul.f32 %v350, %v717
    %v728 = vmul.f32 %v454, %v718
    %v729 = vsub.f32 %v725, %v727
    %v730 = vsub.f32 %v726, %v728
    %v731 = vmul.f32 %v350, %v693
    %v732 = vmul.f32 %v454, %v694
    %v733 = vmul.f32 %v143, %v709
    %v734 = vmul.f32 %v246, %v710
    %v735 = vadd.f32 %v731, %v733
    %v736 = vadd.f32 %v732, %v734
    %v737 = vmul.f32 %v350, %v701
    %v738 = vmul.f32 %v454, %v702
    %v739 = vmul.f32 %v143, %v717
    %v740 = vmul.f32 %v246, %v718
    %v741 = vadd.f32 %v737, %v739
    %v742 = vadd.f32 %v738, %v740
    %v743 = vmul.f32 %v723, %v723
    %v744 = vmul.f32 %v724, %v724
    %v745 = vmul.f32 %v729, %v729
    %v746 = vmul.f32 %v730, %v730
    %v747 = vadd.f32 %v743, %v745
    %v748 = vadd.f32 %v744, %v746
    %v749 = vmul.f32 %v735, %v735
    %v750 = vmul.f32 %v736, %v736
    %v751 = vmul.f32 %v741, %v741
    %v752 = vmul.f32 %v742, %v742
    %v753 = vadd.f32 %v749, %v751
    %v754 = vadd.f32 %v750, %v752
    %v755 = vsub.f32 %v747, %v753
    %v756 = vsub.f32 %v748, %v754
    %v757 = vmul.f32 %v723, %v735
    %v758 = vmul.f32 %v724, %v736
    %v759 = vmul.f32 %v729, %v741
    %v760 = vmul.f32 %v730, %v742
    %v761 = vadd.f32 %v757, %v759
    %v762 = vadd.f32 %v758, %v760
    %v763 = vmul.f32 %v723, %v741
    %v764 = vmul.f32 %v724, %v742
    %v765 = vmul.f32 %v729, %v735
    %v766 = vmul.f32 %v730, %v736
    %v767 = vsub.f32 %v763, %v765
    %v768 = vsub.f32 %v764, %v766
    %v769 = vstv %s684
    %v770 = vmul.f32 %v769, %v755
    %v771 = vmul.f32 %v769, %v756
    %v772 = vstv %s685
    %v773 = vmul.f32 %v772, %v761
    %v774 = vmul.f32 %v772, %v762
    %v775 = vadd.f32 %v770, %v773
    %v776 = vadd.f32 %v771, %v774
    %v777 = vstv %s686
    %v778 = vmul.f32 %v777, %v767
    %v779 = vmul.f32 %v777, %v768
    %v780 = vsub.f32 %v775, %v778
    %v781 = vsub.f32 %v776, %v779
    %v782 = vadd.f32 %v780, 0.5
    %v783 = vadd.f32 %v781, 0.5
    %s784 = scalar_lea.vmem [#allocation7], 32
    %785 = vst [vmem:[%s784] sm:$0xff] %v782
    %786 = vst [vmem:[%s784 + $0x8] sm:$0xff] %v783
    // Predicated region
    $region18: #{tpu_custom_call.1} parent=1 // pred_check
      _
    $region19: #{tpu_custom_call.1} parent=1 // pred_check_branch
      %788 = sbr.rel (0) target = $region21
    $region20: #{tpu_custom_call.1} parent=1 // pred_region
      %s790 = ssub.s32 768, 768
      %791 = vsyncadd [#allocation4], %s790
      %s792 = sshll.u32 [#allocation7], 4
      %s793 = int_to_ptr.vmem [resolvable:$true] %s792
      %798 = dma.vmem_to_hbm [thread:$0]  %s793, 768, %s2, [#allocation4], 128, 128, 8
    $region21: #{tpu_custom_call.1} parent=1 // pred_fallthru
      _
    // Predicated region
    $region22: #{tpu_custom_call.1} parent=1 // pred_check
      _
    $region23: #{tpu_custom_call.1} parent=1 // pred_check_branch
      %800 = sbr.rel (0) target = $region25
    $region24: #{tpu_custom_call.1} parent=1 // pred_region
      %801 = dma.done [#allocation4], 768
    $region25: #{tpu_custom_call.1} parent=1 // pred_fallthru
      _
    %802 = vsyncpa [#allocation3], 1
    %803 = vsyncpa [#allocation4], 1
    %804 = vsyncpa [#allocation5], 1

</llo_original>
